<compile_context>
chip_gen: v6e
topology: v6e:2x2x1
jax: 0.10.0
libtpu: 0.0.40
codegen_flags: <defaults>
</compile_context>

<pallas_src>
import jax
import jax.numpy as jnp
from jax.experimental import pallas as pl
from jax.experimental.pallas import tpu as pltpu

_TARGET_TILE_BYTES = 2 << 20        # ~2 MiB tiles: 2 arrays x 2 buffers = 8 MiB VMEM
_SMALL_WHOLE_ARRAY_BYTES = 2 << 20  # odd-sized arrays up to this run as one block


def _copy_kernel(x_ref, o_ref):
    # Full-tile, lane-dense copy of the current (block_rows, lane) tile.
    o_ref[...] = x_ref[...]


def _lane_width(total: int) -> int:
    """Largest 128-multiple divisor of `total` (0 if none)."""
    for lane in (1024, 512, 256, 128):
        if total % lane == 0:
            return lane
    return 0


def _tiled_copy_2d(x2d: jax.Array) -> jax.Array:
    """Lane-dense tiled identity copy of a (rows, lane) array, lane % 128 == 0."""
    rows, lane = x2d.shape
    itemsize = jnp.dtype(x2d.dtype).itemsize
    sublane_mult = max(8, 32 // itemsize)          # f32->8, bf16->16, int8->32

    # ~2 MiB per tile, rounded to a sublane multiple.
    target_rows = max(sublane_mult, _TARGET_TILE_BYTES // (lane * itemsize))
    target_rows -= target_rows % sublane_mult

    if rows <= target_rows:
        # Single block equal to the full array dims: exact size, no waste,
        # and the (8, 128) divisibility rule does not apply.
        block_rows = rows
    else:
        block_rows = target_rows                   # multiple of sublane_mult
    grid = (pl.cdiv(rows, block_rows),)            # partial last block is masked

    spec = pl.BlockSpec((block_rows, lane), lambda i: (i, 0))

    return pl.pallas_call(
        _copy_kernel,
        out_shape=jax.ShapeDtypeStruct((rows, lane), x2d.dtype),
        grid=grid,
        in_specs=[spec],
        out_specs=spec,
        compiler_params=pltpu.CompilerParams(
            dimension_semantics=("parallel",),     # v7x: split rows across TCs
        ),
        cost_estimate=pl.CostEstimate(
            flops=0,
            transcendentals=0,
            bytes_accessed=2 * rows * lane * itemsize,
        ),
    )(x2d)


def _whole_array_copy(x_flat: jax.Array) -> jax.Array:
    """Single-block copy for small arrays whose size is not a 128 multiple."""
    total = x_flat.shape[0]
    y2d = pl.pallas_call(
        _copy_kernel,
        out_shape=jax.ShapeDtypeStruct((1, total), x_flat.dtype),
    )(x_flat.reshape(1, total))
    return y2d.reshape(total)


def method_forward(x: jax.Array, *, zero_copy: bool = False) -> jax.Array:
    """Identity forward for the abstract `Method` module.

    zero_copy=True returns `x` unchanged (no kernel, no HBM traffic) — the
    fastest possible realization of the identity semantics.  Otherwise the
    data is streamed once HBM->VMEM->HBM through a lane-dense Pallas copy.
    """
    if zero_copy:
        return x

    orig_shape = x.shape
    total = int(x.size)
    itemsize = jnp.dtype(x.dtype).itemsize

    lane = _lane_width(total)
    if lane > 0:
        # Free reshape (row-major preserved), no padding, no tail slice.
        y2d = _tiled_copy_2d(x.reshape(total // lane, lane))
        return y2d.reshape(orig_shape)

    # Element count is not a multiple of 128.
    x_flat = x.reshape(total)
    if total * itemsize <= _SMALL_WHOLE_ARRAY_BYTES:
        return _whole_array_copy(x_flat).reshape(orig_shape)

    # Last resort (large + non-128-multiple): pad up to 128, tile, slice off.
    pad = (-total) % 128
    x_pad = jnp.pad(x_flat, (0, pad))
    lane = _lane_width(total + pad)
    y = _tiled_copy_2d(x_pad.reshape((total + pad) // lane, lane)).reshape(-1)
    return y[:total].reshape(orig_shape)


if __name__ == "__main__":
    key = jax.random.PRNGKey(0)
    x = jax.random.normal(key, (2, 4, 16, 16), dtype=jnp.float32)

    # Kernel path (identity copy streamed through VMEM).
    y = method_forward(x)
    jax.block_until_ready(y)
    assert y.shape == x.shape and y.dtype == x.dtype
    assert bool(jnp.allclose(y, x)), "identity forward mismatch (kernel path)"

    # Zero-copy fast path (no kernel) — also identity.
    z = method_forward(x, zero_copy=True)
    assert bool(jnp.allclose(z, x)), "identity forward mismatch (fast path)"

    print("KERNEL_OK")
</pallas_src>

<mosaic_0001>
module attributes {stable_mosaic.version = 11 : i64} {
  func.func @_copy_kernel(%arg0: i32, %arg1: memref<2x1024xf32, #tpu.memory_space<vmem>>, %arg2: memref<2x1024xf32, #tpu.memory_space<vmem>>) attributes {dimension_semantics = [#tpu.dimension_semantics<parallel>], iteration_bounds = array<i64: 1>, scalar_prefetch = 0 : i64, scratch_operands = 0 : i64, tpu.core_type = #tpu.core_type<tc>, window_params = [{transform_indices = @transform_0, window_bounds = array<i64: 2, 1024>}, {transform_indices = @transform_1, window_bounds = array<i64: 2, 1024>}]} {
    %c0 = arith.constant 0 : index
    %c0_0 = arith.constant 0 : index
    %0 = vector.load %arg1[%c0, %c0_0] : memref<2x1024xf32, #tpu.memory_space<vmem>>, vector<2x1024xf32>
    %c0_1 = arith.constant 0 : index
    %c0_2 = arith.constant 0 : index
    %1 = vector.load %arg2[%c0_1, %c0_2] : memref<2x1024xf32, #tpu.memory_space<vmem>>, vector<2x1024xf32>
    tpu.vector_store %arg2[%c0_1, %c0_2], %0 {strides = array<i32>} : memref<2x1024xf32, #tpu.memory_space<vmem>>, vector<2x1024xf32>,
    return
  }
  func.func @transform_0(%arg0: i32) -> (i32, i32) {
    %c0_i32 = arith.constant 0 : i32
    %c0_i32_0 = arith.constant 0 : i32
    return %arg0, %c0_i32 : i32, i32
  }
  func.func @transform_1(%arg0: i32) -> (i32, i32) {
    %c0_i32 = arith.constant 0 : i32
    %c0_i32_0 = arith.constant 0 : i32
    return %arg0, %c0_i32 : i32, i32
  }
}

</mosaic_0001>

<llo_original>
// kernel: tpu_custom_call.1
$region0: #{tpu_custom_call.1}
  #allocation0 [shape = 'u32[]', space=smem, size = 0x4, offset = 0x4, fixed_abs, tag = 'smem constant byte address 0x4 - core index']
  #allocation1 [shape = 'u32[144,128]{1,0:T(1,128)}', space=vmem, size = 0x12000, scoped, tag = 'internal scratch']
  %s0 = inlined_call_operand.hbm [shape: f32[2,1024], index: 0, kind: input, shape index: {}]
  %s1 = inlined_call_operand.hbm [shape: f32[2,1024], index: 1, kind: output, shape index: {}]
  %s2 = sld [smem:[#allocation0]]
  $region18: #{tpu_custom_call.1} parent=0
    _
  %s4 = ssub.s32 1, %s2
  %s5 = scalar_select 0, %s4, %s2
  $region1: #{tpu_custom_call.1} parent=0
    #allocation2 [shape = 'u8[8192]{0}', space=vmem, size = 0x2000, scoped, tag = 'input window, operand 0, single buffered']
    #allocation3 [shape = 's32[1]{0}', space=sflag, size = 0x4, scoped, tag = 'scoped memory for tpu_custom_call.1']
    #allocation4 [shape = 's32[1]{0}', space=sflag, size = 0x4, scoped, tag = 'scoped memory for tpu_custom_call.1']
    #allocation5 [shape = 'u8[8192]{0}', space=vmem, size = 0x2000, scoped, tag = 'output window, operand 0, single buffered']
    %6 = vsyncpa [#allocation3], 0
    %7 = vsyncpa [#allocation4], 0
    // Predicated region
    $region2: #{tpu_custom_call.1} parent=1 // pred_check
      _
    $region3: #{tpu_custom_call.1} parent=1 // pred_check_branch
      %9 = sbr.rel (0) target = $region5
    $region4: #{tpu_custom_call.1} parent=1 // pred_region
      %s11 = ssub.s32 256, 256
      %12 = vsyncadd [#allocation3], %s11
      %s14 = sshll.u32 [#allocation2], 4
      %s15 = int_to_ptr.vmem [resolvable:$true] %s14
      %17 = dma.hbm_to_vmem [thread:$0]  %s0, 256, %s15, [#allocation3]
    $region5: #{tpu_custom_call.1} parent=1 // pred_fallthru
      _
    // Predicated region
    $region6: #{tpu_custom_call.1} parent=1 // pred_check
      _
    $region7: #{tpu_custom_call.1} parent=1 // pred_check_branch
      %19 = sbr.rel (0) target = $region9
    $region8: #{tpu_custom_call.1} parent=1 // pred_region
      %20 = dma.done [#allocation3], 256
    $region9: #{tpu_custom_call.1} parent=1 // pred_fallthru
      _
    %v21 = vld [vmem:[#allocation2] sm:$0xff]
    %v22 = vld [vmem:[#allocation2 + $0x8] sm:$0xff]
    %23 = vst [vmem:[#allocation5] sm:$0xff] %v21
    %24 = vst [vmem:[#allocation5 + $0x8] sm:$0xff] %v22
    // Predicated region
    $region10: #{tpu_custom_call.1} parent=1 // pred_check
      _
    $region11: #{tpu_custom_call.1} parent=1 // pred_check_branch
      %26 = sbr.rel (0) target = $region13
    $region12: #{tpu_custom_call.1} parent=1 // pred_region
      %s28 = ssub.s32 256, 256
      %29 = vsyncadd [#allocation4], %s28
      %s31 = sshll.u32 [#allocation5], 4
      %s32 = int_to_ptr.vmem [resolvable:$true] %s31
      %34 = dma.vmem_to_hbm [thread:$0]  %s32, 256, %s1, [#allocation4]
    $region13: #{tpu_custom_call.1} parent=1 // pred_fallthru
      _
    // Predicated region
    $region14: #{tpu_custom_call.1} parent=1 // pred_check
      _
    $region15: #{tpu_custom_call.1} parent=1 // pred_check_branch
      %36 = sbr.rel (0) target = $region17
    $region16: #{tpu_custom_call.1} parent=1 // pred_region
      %37 = dma.done [#allocation4], 256
    $region17: #{tpu_custom_call.1} parent=1 // pred_fallthru
      _
    %38 = vsyncpa [#allocation3], 1
    %39 = vsyncpa [#allocation4], 1

</llo_original>
